<compile_context>
chip_gen: v7x
topology: tpu7x:2x2x1
jax: 0.10.0
libtpu: 0.0.40
codegen_flags: <defaults>
</compile_context>

<pallas_src>
import functools

import jax
import jax.numpy as jnp
from jax.experimental import pallas as pl
from jax.experimental.pallas import tpu as pltpu

LANE = 128
SUBLANE = 8

# Single-step streaming tile: 2048 x 128 x 4B = 1 MiB per buffer.  Six streamed
# arrays x double buffering ~= 12 MiB of pipeline VMEM -> fits every
# generation's scoped-VMEM default (16 MiB v5e, 32 MiB v6e/v7x).
FWD_MAX_TILE_ROWS = 2048

# Scan streaming tile is smaller because the time axis is blocked (T_BLK time
# slices per grid step): 512 rows x 128 x 4B = 256 KiB per time slice.
SCAN_MAX_TILE_ROWS = 512
SCAN_MAX_T_BLOCK = 8

# Below this, pallas_call launch overhead dwarfs the HBM time of one
# elementwise pass -> use the fused pure-JAX expression instead.
MIN_PALLAS_NEURONS = 1024


# --------------------------------------------------------------------------
# Host-side helpers
# --------------------------------------------------------------------------
def _padded_size(n):
    """Pad the flat neuron vector so it reshapes to (rows, 128) with rows
    either 1 or a multiple of 8 (the (8, 128) layout constraint)."""
    rows = -(-n // LANE)
    if rows > 1:
        rows = -(-rows // SUBLANE) * SUBLANE
    return rows * LANE, rows


def _pad_flat(v, n_padded):
    n = v.shape[0]
    return v if n == n_padded else jnp.pad(v, (0, n_padded - n))


def _choose_tile_rows(rows, max_tile):
    """8-aligned tile; prefer >=2 tiles so the 'parallel' row axis can be
    sharded across both TensorCores on v7x (megacore)."""
    if rows <= SUBLANE:
        return rows  # single block == full array extent (always legal)
    half = max(SUBLANE, ((rows // 2) // SUBLANE) * SUBLANE)
    return min(max_tile, half)


def _choose_t_block(t_total, max_blk=SCAN_MAX_T_BLOCK):
    """Largest divisor of T that is <= max_blk (keeps the time grid exact,
    avoiding garbage recurrent updates from padded time steps)."""
    for cand in range(min(max_blk, t_total), 0, -1):
        if t_total % cand == 0:
            return cand
    return 1


def _precompute_params(params):
    """Hoist the sigmoids and fuse the blend coefficients host-side.

      newShort = sd*stm + (1-sd)*x
      newLong  = ld*ltm + (1-ld)*x
      blended  = sg*newShort + lg*newLong + cg*x
               = (sg*sd)*stm + (lg*ld)*ltm + (sg*(1-sd)+lg*(1-ld)+cg)*x

    The kernel then needs 7 scalars, and the three output streams are mutually
    independent (no new_s/new_l -> blended dependency chain).
    """
    p = params.astype(jnp.float32)
    sd = jax.nn.sigmoid(p[0])
    ld = jax.nn.sigmoid(p[1])
    sg, lg, cg = p[2], p[3], p[4]
    return jnp.stack([
        sd, 1.0 - sd, ld, 1.0 - ld,
        sg * sd, lg * ld, sg * (1.0 - sd) + lg * (1.0 - ld) + cg,
    ])


def _latest_gates(params):
    gate_sum = params[2] + params[3] + params[4] + 1e-9
    return jnp.stack(
        [params[2] / gate_sum, params[3] / gate_sum, params[4] / gate_sum])


# --------------------------------------------------------------------------
# Single-step kernel: one forward() call, tiled over rows.
# --------------------------------------------------------------------------
def _memory_kernel(params_ref, x_ref, stm_ref, ltm_ref,
                   out_ref, new_stm_ref, new_ltm_ref):
    sd = params_ref[0]        # sigmoid(shortTermDecay)
    one_m_sd = params_ref[1]  # 1 - sigmoid(shortTermDecay)
    ld = params_ref[2]
    one_m_ld = params_ref[3]
    a = params_ref[4]         # shortGate * shortDecay
    b = params_ref[5]         # longGate  * longDecay
    c = params_ref[6]         # shortGate*(1-sd) + longGate*(1-ld) + currentGate

    x = x_ref[...]
    stm = stm_ref[...]
    ltm = ltm_ref[...]
    out_ref[...] = a * stm + b * ltm + c * x
    new_stm_ref[...] = sd * stm + one_m_sd * x
    new_ltm_ref[...] = ld * ltm + one_m_ld * x


@functools.partial(jax.jit, donate_argnums=(1, 2))
def memory_layer_forward(x, short_mem, long_mem, params):
    """One MEMORYLAYER.forward() call.

    x, short_mem, long_mem: f32[numNeurons]; params: f32[5] =
    [shortTermDecay, longTermDecay, shortGate, longGate, currentGate].
    Returns (blendedActivations, newShortTermMemory, newLongTermMemory,
    latestMemoryGates).  Memory state is updated in place (aliasing+donation),
    matching the module's self.shortTermMemory / self.longTermMemory rebinding.
    """
    n = x.shape[0]
    gates = _latest_gates(params)

    if n < MIN_PALLAS_NEURONS:
        # Launch overhead >> HBM time at this size; let XLA fuse it.
        sd = jax.nn.sigmoid(params[0])
        ld = jax.nn.sigmoid(params[1])
        new_s = sd * short_mem + (1.0 - sd) * x
        new_l = ld * long_mem + (1.0 - ld) * x
        blended = params[2] * new_s + params[3] * new_l + params[4] * x
        return blended, new_s, new_l, gates

    kparams = _precompute_params(params)

    n_padded, rows = _padded_size(n)
    x2 = _pad_flat(x, n_padded).reshape(rows, LANE)
    s2 = _pad_flat(short_mem, n_padded).reshape(rows, LANE)
    l2 = _pad_flat(long_mem, n_padded).reshape(rows, LANE)

    tile_rows = _choose_tile_rows(rows, FWD_MAX_TILE_ROWS)
    vec_spec = pl.BlockSpec((tile_rows, LANE), lambda i: (i, 0))
    out_sds = jax.ShapeDtypeStruct((rows, LANE), jnp.float32)

    blended, new_stm, new_ltm = pl.pallas_call(
        _memory_kernel,
        out_shape=(out_sds, out_sds, out_sds),
        grid=(pl.cdiv(rows, tile_rows),),
        in_specs=[
            pl.BlockSpec(memory_space=pltpu.MemorySpace.SMEM),  # 7 scalars
            vec_spec,   # x
            vec_spec,   # short-term memory
            vec_spec,   # long-term memory
        ],
        out_specs=(vec_spec, vec_spec, vec_spec),
        # stm -> new_stm, ltm -> new_ltm updated in place.
        input_output_aliases={2: 1, 3: 2},
        compiler_params=pltpu.CompilerParams(
            dimension_semantics=("parallel",)),
        cost_estimate=pl.CostEstimate(
            flops=11 * n, transcendentals=0, bytes_accessed=24 * n),
    )(kparams, x2, s2, l2)

    return (blended.reshape(-1)[:n], new_stm.reshape(-1)[:n],
            new_ltm.reshape(-1)[:n], gates)


# --------------------------------------------------------------------------
# Fused-recurrence kernel: T forward() calls in one pallas_call.
# The time axis is blocked (T_BLK steps per grid step) and the recurrent
# state stays resident in VMEM scratch; only x_t streams in and blended_t
# streams out (8 B/elem/step of HBM traffic at steady state).
# --------------------------------------------------------------------------
def _memory_scan_kernel(params_ref, x_ref, stm0_ref, ltm0_ref,
                        blended_ref, new_stm_ref, new_ltm_ref,
                        stm_sc, ltm_sc):
    t = pl.program_id(1)

    @pl.when(t == 0)
    def _():
        stm_sc[...] = stm0_ref[...]
        ltm_sc[...] = ltm0_ref[...]

    sd = params_ref[0]
    one_m_sd = params_ref[1]
    ld = params_ref[2]
    one_m_ld = params_ref[3]
    a = params_ref[4]
    b = params_ref[5]
    c = params_ref[6]

    t_blk = x_ref.shape[0]
    # Statically unrolled loop over the time block (T_BLK <= 8): static
    # leading-index slices of x_ref / blended_ref are zero-cost views.
    for i in range(t_blk):
        x = x_ref[i]
        stm = stm_sc[...]
        ltm = ltm_sc[...]
        blended_ref[i] = a * stm + b * ltm + c * x
        stm_sc[...] = sd * stm + one_m_sd * x
        ltm_sc[...] = ld * ltm + one_m_ld * x

    @pl.when(t == pl.num_programs(1) - 1)
    def _():
        new_stm_ref[...] = stm_sc[...]
        new_ltm_ref[...] = ltm_sc[...]


@functools.partial(jax.jit, donate_argnums=(1, 2))
def memory_layer_scan(xs, short_mem, long_mem, params):
    """xs: f32[T, numNeurons].  Applies the memory layer recurrently over T
    steps in one kernel.  Returns (blended[T, N], new_stm[N], new_ltm[N],
    latestMemoryGates[3]).  State outputs alias the state inputs."""
    t_total, n = xs.shape
    kparams = _precompute_params(params)
    gates = _latest_gates(params)

    n_padded, rows = _padded_size(n)
    xp = xs if n == n_padded else jnp.pad(xs, ((0, 0), (0, n_padded - n)))
    x3 = xp.reshape(t_total, rows, LANE)
    s2 = _pad_flat(short_mem, n_padded).reshape(rows, LANE)
    l2 = _pad_flat(long_mem, n_padded).reshape(rows, LANE)

    tile_rows = _choose_tile_rows(rows, SCAN_MAX_TILE_ROWS)
    t_blk = _choose_t_block(t_total)

    x_spec = pl.BlockSpec((t_blk, tile_rows, LANE), lambda r, t: (t, r, 0))
    state_spec = pl.BlockSpec((tile_rows, LANE), lambda r, t: (r, 0))

    blended, new_stm, new_ltm = pl.pallas_call(
        _memory_scan_kernel,
        out_shape=(jax.ShapeDtypeStruct((t_total, rows, LANE), jnp.float32),
                   jax.ShapeDtypeStruct((rows, LANE), jnp.float32),
                   jax.ShapeDtypeStruct((rows, LANE), jnp.float32)),
        grid=(pl.cdiv(rows, tile_rows), t_total // t_blk),
        in_specs=[
            pl.BlockSpec(memory_space=pltpu.MemorySpace.SMEM),  # 7 scalars
            x_spec,       # x_t stream (time-blocked)
            state_spec,   # initial short-term memory
            state_spec,   # initial long-term memory
        ],
        out_specs=(x_spec, state_spec, state_spec),
        scratch_shapes=[pltpu.VMEM((tile_rows, LANE), jnp.float32),
                        pltpu.VMEM((tile_rows, LANE), jnp.float32)],
        # stm0 -> new_stm, ltm0 -> new_ltm updated in place.
        input_output_aliases={2: 1, 3: 2},
        compiler_params=pltpu.CompilerParams(
            dimension_semantics=("parallel", "arbitrary")),
        cost_estimate=pl.CostEstimate(
            flops=11 * n * t_total, transcendentals=0,
            bytes_accessed=4 * (2 * t_total * n + 4 * n)),
    )(kparams, x3, s2, l2)

    blended = blended.reshape(t_total, -1)[:, :n]
    return blended, new_stm.reshape(-1)[:n], new_ltm.reshape(-1)[:n], gates


# --------------------------------------------------------------------------
# Pure-JAX reference (mirrors the torch forward exactly).
# --------------------------------------------------------------------------
def _reference(x, short_mem, long_mem, params):
    short_decay = jax.nn.sigmoid(params[0])
    long_decay = jax.nn.sigmoid(params[1])
    new_s = short_decay * short_mem + (1.0 - short_decay) * x
    new_l = long_decay * long_mem + (1.0 - long_decay) * x
    blended = params[2] * new_s + params[3] * new_l + params[4] * x
    return blended, new_s, new_l


if __name__ == "__main__":
    num_neurons = 8192   # rows=64 -> 2 row blocks (keeps both v7x TCs busy)
    seq_len = 16         # scan: T_BLK=8 -> 2 time blocks

    key = jax.random.PRNGKey(0)
    k1, k2, k3, k4 = jax.random.split(key, 4)
    x1 = jax.random.normal(k1, (num_neurons,), dtype=jnp.float32)
    x2 = jax.random.normal(k2, (num_neurons,), dtype=jnp.float32)
    xs = jax.random.normal(k3, (seq_len, num_neurons), dtype=jnp.float32)

    # Parameter init matching __init__:
    # shortTermDecay=0.7, longTermDecay=0.95, shortGate=0.25, longGate=0.25,
    # currentGate=0.5
    params = jnp.array([0.7, 0.95, 0.25, 0.25, 0.5], dtype=jnp.float32)

    # ---- Single-step kernel: two chained calls, state carried in place ----
    zeros = jnp.zeros((num_neurons,), dtype=jnp.float32)
    ref_b1, ref_s1, ref_l1 = _reference(x1, zeros, zeros, params)
    ref_b2, ref_s2, ref_l2 = _reference(x2, ref_s1, ref_l1, params)

    b1, s1, l1, gates = memory_layer_forward(
        x1, jnp.zeros_like(x1), jnp.zeros_like(x1), params)
    jax.block_until_ready((b1, s1, l1, gates))
    assert jnp.allclose(b1, ref_b1, atol=1e-5)
    assert jnp.allclose(s1, ref_s1, atol=1e-5)
    assert jnp.allclose(l1, ref_l1, atol=1e-5)
    ref_gates = jnp.array([0.25, 0.25, 0.5]) / (1.0 + 1e-9)
    assert jnp.allclose(gates, ref_gates, atol=1e-6)

    # s1/l1 are donated into the next step (in-place state update).
    b2, s2, l2, _ = memory_layer_forward(x2, s1, l1, params)
    jax.block_until_ready((b2, s2, l2))
    assert jnp.allclose(b2, ref_b2, atol=1e-5)
    assert jnp.allclose(s2, ref_s2, atol=1e-5)
    assert jnp.allclose(l2, ref_l2, atol=1e-5)

    # ---- Fused-recurrence kernel (T steps, time-blocked) -------------------
    bs, sT, lT, _ = memory_layer_scan(
        xs, jnp.zeros_like(x1), jnp.zeros_like(x1), params)
    jax.block_until_ready((bs, sT, lT))
    ref_s, ref_l = zeros, zeros
    for t in range(seq_len):
        ref_bt, ref_s, ref_l = _reference(xs[t], ref_s, ref_l, params)
        assert jnp.allclose(bs[t], ref_bt, atol=1e-5)
    assert jnp.allclose(sT, ref_s, atol=1e-5)
    assert jnp.allclose(lT, ref_l, atol=1e-5)

    # ---- Ragged rows: last row block is partial (Pallas-padded) ------------
    n_ragged = 40 * LANE   # rows=40, tile=16 -> 3 row blocks, last has 8 rows
    xr = jax.random.normal(k4, (n_ragged,), dtype=jnp.float32)
    zr = jnp.zeros((n_ragged,), dtype=jnp.float32)
    ref_br, ref_sr, ref_lr = _reference(xr, zr, zr, params)
    br, sr, lr, _ = memory_layer_forward(
        xr, jnp.zeros_like(xr), jnp.zeros_like(xr), params)
    jax.block_until_ready((br, sr, lr))
    assert jnp.allclose(br, ref_br, atol=1e-5)
    assert jnp.allclose(sr, ref_sr, atol=1e-5)
    assert jnp.allclose(lr, ref_lr, atol=1e-5)

    print("KERNEL_OK")
</pallas_src>

<mosaic_0001>
module attributes {stable_mosaic.version = 11 : i64} {
  func.func @_memory_kernel(%arg0: i32, %arg1: memref<7xf32, #tpu.memory_space<smem>>, %arg2: memref<32x128xf32, #tpu.memory_space<vmem>>, %arg3: memref<32x128xf32, #tpu.memory_space<vmem>>, %arg4: memref<32x128xf32, #tpu.memory_space<vmem>>, %arg5: memref<32x128xf32, #tpu.memory_space<vmem>>, %arg6: memref<32x128xf32, #tpu.memory_space<vmem>>, %arg7: memref<32x128xf32, #tpu.memory_space<vmem>>) attributes {dimension_semantics = [#tpu.dimension_semantics<parallel>], iteration_bounds = array<i64: 2>, scalar_prefetch = 0 : i64, scratch_operands = 0 : i64, tpu.core_type = #tpu.core_type<tc>, window_params = [{transform_indices = @transform_0, window_bounds = array<i64: 7>}, {transform_indices = @transform_1, window_bounds = array<i64: 32, 128>}, {transform_indices = @transform_2, window_bounds = array<i64: 32, 128>}, {transform_indices = @transform_3, window_bounds = array<i64: 32, 128>}, {transform_indices = @transform_4, window_bounds = array<i64: 32, 128>}, {transform_indices = @transform_5, window_bounds = array<i64: 32, 128>}, {transform_indices = @transform_6, window_bounds = array<i64: 32, 128>}]} {
    %c0 = arith.constant 0 : index
    %0 = memref.load %arg1[%c0] : memref<7xf32, #tpu.memory_space<smem>>
    %c1 = arith.constant 1 : index
    %1 = memref.load %arg1[%c1] : memref<7xf32, #tpu.memory_space<smem>>
    %c2 = arith.constant 2 : index
    %2 = memref.load %arg1[%c2] : memref<7xf32, #tpu.memory_space<smem>>
    %c3 = arith.constant 3 : index
    %3 = memref.load %arg1[%c3] : memref<7xf32, #tpu.memory_space<smem>>
    %c4 = arith.constant 4 : index
    %4 = memref.load %arg1[%c4] : memref<7xf32, #tpu.memory_space<smem>>
    %c5 = arith.constant 5 : index
    %5 = memref.load %arg1[%c5] : memref<7xf32, #tpu.memory_space<smem>>
    %c6 = arith.constant 6 : index
    %6 = memref.load %arg1[%c6] : memref<7xf32, #tpu.memory_space<smem>>
    %c0_0 = arith.constant 0 : index
    %c0_1 = arith.constant 0 : index
    %7 = vector.load %arg2[%c0_0, %c0_1] : memref<32x128xf32, #tpu.memory_space<vmem>>, vector<32x128xf32>
    %c0_2 = arith.constant 0 : index
    %c0_3 = arith.constant 0 : index
    %8 = vector.load %arg3[%c0_2, %c0_3] : memref<32x128xf32, #tpu.memory_space<vmem>>, vector<32x128xf32>
    %c0_4 = arith.constant 0 : index
    %c0_5 = arith.constant 0 : index
    %9 = vector.load %arg4[%c0_4, %c0_5] : memref<32x128xf32, #tpu.memory_space<vmem>>, vector<32x128xf32>
    %10 = vector.broadcast %4 : f32 to vector<32x128xf32>
    %11 = arith.mulf %10, %8 : vector<32x128xf32>
    %12 = vector.broadcast %5 : f32 to vector<32x128xf32>
    %13 = arith.mulf %12, %9 : vector<32x128xf32>
    %14 = arith.addf %11, %13 : vector<32x128xf32>
    %15 = vector.broadcast %6 : f32 to vector<32x128xf32>
    %16 = arith.mulf %15, %7 : vector<32x128xf32>
    %17 = arith.addf %14, %16 : vector<32x128xf32>
    %c0_6 = arith.constant 0 : index
    %c0_7 = arith.constant 0 : index
    %18 = vector.load %arg5[%c0_6, %c0_7] : memref<32x128xf32, #tpu.memory_space<vmem>>, vector<32x128xf32>
    tpu.vector_store %arg5[%c0_6, %c0_7], %17 {strides = array<i32>} : memref<32x128xf32, #tpu.memory_space<vmem>>, vector<32x128xf32>,
    %19 = vector.broadcast %0 : f32 to vector<32x128xf32>
    %20 = arith.mulf %19, %8 : vector<32x128xf32>
    %21 = vector.broadcast %1 : f32 to vector<32x128xf32>
    %22 = arith.mulf %21, %7 : vector<32x128xf32>
    %23 = arith.addf %20, %22 : vector<32x128xf32>
    %c0_8 = arith.constant 0 : index
    %c0_9 = arith.constant 0 : index
    %24 = vector.load %arg6[%c0_8, %c0_9] : memref<32x128xf32, #tpu.memory_space<vmem>>, vector<32x128xf32>
    tpu.vector_store %arg6[%c0_8, %c0_9], %23 {strides = array<i32>} : memref<32x128xf32, #tpu.memory_space<vmem>>, vector<32x128xf32>,
    %25 = vector.broadcast %2 : f32 to vector<32x128xf32>
    %26 = arith.mulf %25, %9 : vector<32x128xf32>
    %27 = vector.broadcast %3 : f32 to vector<32x128xf32>
    %28 = arith.mulf %27, %7 : vector<32x128xf32>
    %29 = arith.addf %26, %28 : vector<32x128xf32>
    %c0_10 = arith.constant 0 : index
    %c0_11 = arith.constant 0 : index
    %30 = vector.load %arg7[%c0_10, %c0_11] : memref<32x128xf32, #tpu.memory_space<vmem>>, vector<32x128xf32>
    tpu.vector_store %arg7[%c0_10, %c0_11], %29 {strides = array<i32>} : memref<32x128xf32, #tpu.memory_space<vmem>>, vector<32x128xf32>,
    return
  }
  func.func @transform_0(%arg0: i32) -> i32 {
    %c0_i32 = arith.constant 0 : i32
    %c0_i32_0 = arith.constant 0 : i32
    return %c0_i32 : i32
  }
  func.func @transform_1(%arg0: i32) -> (i32, i32) {
    %c0_i32 = arith.constant 0 : i32
    %c0_i32_0 = arith.constant 0 : i32
    return %arg0, %c0_i32 : i32, i32
  }
  func.func @transform_2(%arg0: i32) -> (i32, i32) {
    %c0_i32 = arith.constant 0 : i32
    %c0_i32_0 = arith.constant 0 : i32
    return %arg0, %c0_i32 : i32, i32
  }
  func.func @transform_3(%arg0: i32) -> (i32, i32) {
    %c0_i32 = arith.constant 0 : i32
    %c0_i32_0 = arith.constant 0 : i32
    return %arg0, %c0_i32 : i32, i32
  }
  func.func @transform_4(%arg0: i32) -> (i32, i32) {
    %c0_i32 = arith.constant 0 : i32
    %c0_i32_0 = arith.constant 0 : i32
    return %arg0, %c0_i32 : i32, i32
  }
  func.func @transform_5(%arg0: i32) -> (i32, i32) {
    %c0_i32 = arith.constant 0 : i32
    %c0_i32_0 = arith.constant 0 : i32
    return %arg0, %c0_i32 : i32, i32
  }
  func.func @transform_6(%arg0: i32) -> (i32, i32) {
    %c0_i32 = arith.constant 0 : i32
    %c0_i32_0 = arith.constant 0 : i32
    return %arg0, %c0_i32 : i32, i32
  }
}

</mosaic_0001>

<llo_original>
// kernel: memory_layer_forward.1
$region0: #{memory_layer_forward.1}
  #allocation0 [shape = 'u32[]', space=smem, size = 0x4, offset = 0x4, fixed_abs, tag = 'smem constant byte address 0x4 - core index']
  #allocation1 [shape = 'u32[144,128]{1,0:T(1,128)}', space=vmem, size = 0x12000, scoped, tag = 'internal scratch']
  %s0 = inlined_call_operand.vmem [shape: f32[7], index: 0, kind: input, shape index: {}]
  %s1 = inlined_call_operand.vmem [shape: f32[64,128], index: 1, kind: input, shape index: {}]
  %s2 = inlined_call_operand.vmem [shape: f32[64,128], index: 2, kind: input, shape index: {}, may-alias: {2,5}]
  %s3 = inlined_call_operand.vmem [shape: f32[64,128], index: 3, kind: input, shape index: {}, may-alias: {3,6}]
  %s4 = inlined_call_operand.vmem [shape: f32[64,128], index: 4, kind: output, shape index: {0}]
  %s5 = inlined_call_operand.vmem [shape: f32[64,128], index: 5, kind: output, shape index: {1}, may-alias: {2,5}]
  %s6 = inlined_call_operand.vmem [shape: f32[64,128], index: 6, kind: output, shape index: {2}, may-alias: {3,6}]
  %7 = xla_tuple %s4, %s5, %s6
  %s8 = sld [smem:[#allocation0]]
  $region69: #{memory_layer_forward.1} parent=0
    _
  %s10 = ssub.s32 1, %s8
  %s11 = scalar_select 0, %s10, %s8
  $region1: #{memory_layer_forward.1} parent=0
    #allocation2 [shape = 'u8[512]{0}', space=smem, size = 0x200, scoped, tag = 'input window, operand 0, single buffered']
    #allocation3 [shape = 's32[2]{0}', space=sflag, size = 0x8, scoped, tag = 'scoped memory for memory_layer_forward.1']
    %12 = vsyncpa [#allocation3], 0
    loop: start=0, step=1, limit=4
    $region2: #{memory_layer_forward.1} parent=1 // loop_pre_header
      _
    $region3: #{memory_layer_forward.1} parent=1 // loop_header
      %s14 = sphi 0, %s18
      %p15 = scmp.ge.s32.totalorder %s14, 4
      %s22 = sphi 0, %s22
      %s24 = sphi 0, %s22
      %s25 = sphi 0, %s24
      %s39 = sphi 0, %s25
      %s45 = sphi 0, %s47
      %s48 = sphi 0, %s45
      %s49 = sphi 0, %s48
      %s65 = sphi 0, %s49
      %s71 = sphi 0, %s73
      %s74 = sphi 0, %s71
      %s75 = sphi 0, %s74
      %s91 = sphi 0, %s75
      %s97 = sphi 0, %s99
      %s100 = sphi 0, %s97
      %s101 = sphi 0, %s100
      %s117 = sphi 0, %s101
      %s123 = sphi 0, %s125
      %s126 = sphi 0, %s123
      %s127 = sphi 0, %s126
      %s143 = sphi 0, %s127
      %s149 = sphi 0, %s151
      %s152 = sphi 0, %s149
      %s153 = sphi 0, %s152
      %s169 = sphi 0, %s153
      %s175 = sphi 0, %s177
      %s178 = sphi 0, %s175
      %s179 = sphi 0, %s178
      %s195 = sphi 0, %s179
    $region4: #{memory_layer_forward.1} parent=1 // loop_header_branch
      %17 = sbr.rel (%p15) target = $region8
    $region5: #{memory_layer_forward.1} parent=1 // loop_body
      %s19 = ssub.s32 %s14, 1
      %s20 = ssub.s32 %s14, 2
      %s21 = sadd.s32 %s14, 1
      %s23 = sadd.s32 %s22, 1
      %p26 = scmp.eq.s32.totalorder %s14, 1
      %p27 = scmp.ne.s32.totalorder %s22, %s24
      %p28 = scmp.eq.s32.totalorder %s14, 0
      %p29 = por %p27, %p28
      %p30 = scmp.ne.s32.totalorder %s22, %s24
      %p31 = scmp.eq.s32.totalorder %s19, 1
      %p32 = por %p30, %p31
      %p33 = scmp.ne.s32.totalorder %s24, %s25
      %p34 = scmp.eq.s32.totalorder %s19, 0
      %p35 = por %p33, %p34
      %p36 = scmp.ne.s32.totalorder %s24, %s25
      %p37 = scmp.eq.s32.totalorder %s20, 1
      %p38 = por %p36, %p37
      %p40 = scmp.ne.s32.totalorder %s25, %s39
      %p41 = scmp.eq.s32.totalorder %s20, 0
      %p42 = por %p40, %p41
      %s43 = ssub.s32 %s14, %s21
      %p44 = scmp.eq.s32.totalorder %s43, 0
      %s46 = sadd.s32 %s45, 1
      %s47 = scalar_select %p44, %s45, %s46
      %p50 = pneg %p44
      %p51 = scmp.eq.s32.totalorder %s14, 1
      %p52 = por %p50, %p51
      %p53 = scmp.ne.s32.totalorder %s45, %s48
      %p54 = scmp.eq.s32.totalorder %s14, 0
      %p55 = por %p53, %p54
      %p56 = scmp.ne.s32.totalorder %s45, %s48
      %p57 = scmp.eq.s32.totalorder %s19, 1
      %p58 = por %p56, %p57
      %p59 = scmp.ne.s32.totalorder %s48, %s49
      %p60 = scmp.eq.s32.totalorder %s19, 0
      %p61 = por %p59, %p60
      %p62 = scmp.ne.s32.totalorder %s48, %s49
      %p63 = scmp.eq.s32.totalorder %s20, 1
      %p64 = por %p62, %p63
      %p66 = scmp.ne.s32.totalorder %s49, %s65
      %p67 = scmp.eq.s32.totalorder %s20, 0
      %p68 = por %p66, %p67
      %s69 = ssub.s32 %s14, %s21
      %p70 = scmp.eq.s32.totalorder %s69, 0
      %s72 = sadd.s32 %s71, 1
      %s73 = scalar_select %p70, %s71, %s72
      %p76 = pneg %p70
      %p77 = scmp.eq.s32.totalorder %s14, 1
      %p78 = por %p76, %p77
      %p79 = scmp.ne.s32.totalorder %s71, %s74
      %p80 = scmp.eq.s32.totalorder %s14, 0
      %p81 = por %p79, %p80
      %p82 = scmp.ne.s32.totalorder %s71, %s74
      %p83 = scmp.eq.s32.totalorder %s19, 1
      %p84 = por %p82, %p83
      %p85 = scmp.ne.s32.totalorder %s74, %s75
      %p86 = scmp.eq.s32.totalorder %s19, 0
      %p87 = por %p85, %p86
      %p88 = scmp.ne.s32.totalorder %s74, %s75
      %p89 = scmp.eq.s32.totalorder %s20, 1
      %p90 = por %p88, %p89
      %p92 = scmp.ne.s32.totalorder %s75, %s91
      %p93 = scmp.eq.s32.totalorder %s20, 0
      %p94 = por %p92, %p93
      %s95 = ssub.s32 %s14, %s21
      %p96 = scmp.eq.s32.totalorder %s95, 0
      %s98 = sadd.s32 %s97, 1
      %s99 = scalar_select %p96, %s97, %s98
      %p102 = pneg %p96
      %p103 = scmp.eq.s32.totalorder %s14, 1
      %p104 = por %p102, %p103
      %p105 = scmp.ne.s32.totalorder %s97, %s100
      %p106 = scmp.eq.s32.totalorder %s14, 0
      %p107 = por %p105, %p106
      %p108 = scmp.ne.s32.totalorder %s97, %s100
      %p109 = scmp.eq.s32.totalorder %s19, 1
      %p110 = por %p108, %p109
      %p111 = scmp.ne.s32.totalorder %s100, %s101
      %p112 = scmp.eq.s32.totalorder %s19, 0
      %p113 = por %p111, %p112
      %p114 = scmp.ne.s32.totalorder %s100, %s101
      %p115 = scmp.eq.s32.totalorder %s20, 1
      %p116 = por %p114, %p115
      %p118 = scmp.ne.s32.totalorder %s101, %s117
      %p119 = scmp.eq.s32.totalorder %s20, 0
      %p120 = por %p118, %p119
      %s121 = ssub.s32 %s14, %s21
      %p122 = scmp.eq.s32.totalorder %s121, 0
      %s124 = sadd.s32 %s123, 1
      %s125 = scalar_select %p122, %s123, %s124
      %p128 = pneg %p122
      %p129 = scmp.eq.s32.totalorder %s14, 1
      %p130 = por %p128, %p129
      %p131 = scmp.ne.s32.totalorder %s123, %s126
      %p132 = scmp.eq.s32.totalorder %s14, 0
      %p133 = por %p131, %p132
      %p134 = scmp.ne.s32.totalorder %s123, %s126
      %p135 = scmp.eq.s32.totalorder %s19, 1
      %p136 = por %p134, %p135
      %p137 = scmp.ne.s32.totalorder %s126, %s127
      %p138 = scmp.eq.s32.totalorder %s19, 0
      %p139 = por %p137, %p138
      %p140 = scmp.ne.s32.totalorder %s126, %s127
      %p141 = scmp.eq.s32.totalorder %s20, 1
      %p142 = por %p140, %p141
      %p144 = scmp.ne.s32.totalorder %s127, %s143
      %p145 = scmp.eq.s32.totalorder %s20, 0
      %p146 = por %p144, %p145
      %s147 = ssub.s32 %s14, %s21
      %p148 = scmp.eq.s32.totalorder %s147, 0
      %s150 = sadd.s32 %s149, 1
      %s151 = scalar_select %p148, %s149, %s150
      %p154 = pneg %p148
      %p155 = scmp.eq.s32.totalorder %s14, 1
      %p156 = por %p154, %p155
      %p157 = scmp.ne.s32.totalorder %s149, %s152
      %p158 = scmp.eq.s32.totalorder %s14, 0
      %p159 = por %p157, %p158
      %p160 = scmp.ne.s32.totalorder %s149, %s152
      %p161 = scmp.eq.s32.totalorder %s19, 1
      %p162 = por %p160, %p161
      %p163 = scmp.ne.s32.totalorder %s152, %s153
      %p164 = scmp.eq.s32.totalorder %s19, 0
      %p165 = por %p163, %p164
      %p166 = scmp.ne.s32.totalorder %s152, %s153
      %p167 = scmp.eq.s32.totalorder %s20, 1
      %p168 = por %p166, %p167
      %p170 = scmp.ne.s32.totalorder %s153, %s169
      %p171 = scmp.eq.s32.totalorder %s20, 0
      %p172 = por %p170, %p171
      %s173 = ssub.s32 %s14, %s21
      %p174 = scmp.eq.s32.totalorder %s173, 0
      %s176 = sadd.s32 %s175, 1
      %s177 = scalar_select %p174, %s175, %s176
      %p180 = pneg %p174
      %p181 = scmp.eq.s32.totalorder %s14, 1
      %p182 = por %p180, %p181
      %p183 = scmp.ne.s32.totalorder %s175, %s178
      %p184 = scmp.eq.s32.totalorder %s14, 0
      %p185 = por %p183, %p184
      %p186 = scmp.ne.s32.totalorder %s175, %s178
      %p187 = scmp.eq.s32.totalorder %s19, 1
      %p188 = por %p186, %p187
      %p189 = scmp.ne.s32.totalorder %s178, %s179
      %p190 = scmp.eq.s32.totalorder %s19, 0
      %p191 = por %p189, %p190
      %p192 = scmp.ne.s32.totalorder %s178, %s179
      %p193 = scmp.eq.s32.totalorder %s20, 1
      %p194 = por %p192, %p193
      %p196 = scmp.ne.s32.totalorder %s179, %s195
      %p197 = scmp.eq.s32.totalorder %s20, 0
      %p198 = por %p196, %p197
      %p199 = scmp.le.s32.totalorder 1, %s14
      %p200 = scmp.lt.s32.totalorder %s14, 3
      %p201 = pnand %p199, %p200
      %p202 = pneg %p201
      // Predicated region
      $region9: #{memory_layer_forward.1} parent=5 // pred_check
        _
      $region10: #{memory_layer_forward.1} parent=5 // pred_check_branch
        %204 = sbr.rel (%p201) target = $region12
      $region11: #{memory_layer_forward.1} parent=5 // pred_region
        %s205 = ssub.s32 %s14, 1
        // Predicated region
        $region13: #{memory_layer_forward.1} parent=11 // pred_check
          %p206 = pneg %p35
        $region14: #{memory_layer_forward.1} parent=11 // pred_check_branch
          %208 = sbr.rel (%p206) target = $region16
        $region15: #{memory_layer_forward.1} parent=11 // pred_region
          %s210 = ssub.s32 16, 16
          %211 = vsyncadd [#allocation3], %s210
          %s213 = sshll.u32 %s0, 4
          %s214 = int_to_ptr.vmem [resolvable:$true] %s213
          %216 = dma.vmem_to_smem %s214, 16, [#allocation2], [#allocation3]
        $region16: #{memory_layer_forward.1} parent=11 // pred_fallthru
          _
      $region12: #{memory_layer_forward.1} parent=5 // pred_fallthru
        _
      %p217 = scmp.lt.s32.totalorder %s14, 2
      // Predicated region
      $region17: #{memory_layer_forward.1} parent=5 // pred_check
        %p218 = pneg %p217
      $region18: #{memory_layer_forward.1} parent=5 // pred_check_branch
        %220 = sbr.rel (%p218) target = $region20
      $region19: #{memory_layer_forward.1} parent=5 // pred_region
        // Predicated region
        $region21: #{memory_layer_forward.1} parent=19 // pred_check
          %p221 = pneg %p55
        $region22: #{memory_layer_forward.1} parent=19 // pred_check_branch
          %223 = sbr.rel (%p221) target = $region24
        $region23: #{memory_layer_forward.1} parent=19 // pred_region
          %s224 = smul.u32 4, %s14
          %p225 = scmp.lt.s32.totalorder %s224, 7
          %s226 = scalar_select %p225, %s224, 7
          %s227 = smul.addr %s226, 8
          %s228 = scalar_lea.vmem %s1, %s227
          %s229 = smul.u32 4, %s14
        $region24: #{memory_layer_forward.1} parent=19 // pred_fallthru
          _
        // Predicated region
        $region25: #{memory_layer_forward.1} parent=19 // pred_check
          %p230 = pneg %p81
        $region26: #{memory_layer_forward.1} parent=19 // pred_check_branch
          %232 = sbr.rel (%p230) target = $region28
        $region27: #{memory_layer_forward.1} parent=19 // pred_region
          %s233 = smul.u32 4, %s14
          %p234 = scmp.lt.s32.totalorder %s233, 7
          %s235 = scalar_select %p234, %s233, 7
          %s236 = smul.addr %s235, 8
          %s237 = scalar_lea.vmem %s2, %s236
          %s238 = smul.u32 4, %s14
        $region28: #{memory_layer_forward.1} parent=19 // pred_fallthru
          _
        // Predicated region
        $region29: #{memory_layer_forward.1} parent=19 // pred_check
          %p239 = pneg %p107
        $region30: #{memory_layer_forward.1} parent=19 // pred_check_branch
          %241 = sbr.rel (%p239) target = $region32
        $region31: #{memory_layer_forward.1} parent=19 // pred_region
          %s242 = smul.u32 4, %s14
          %p243 = scmp.lt.s32.totalorder %s242, 7
          %s244 = scalar_select %p243, %s242, 7
          %s245 = smul.addr %s244, 8
          %s246 = scalar_lea.vmem %s3, %s245
          %s247 = smul.u32 4, %s14
        $region32: #{memory_layer_forward.1} parent=19 // pred_fallthru
          _
      $region20: #{memory_layer_forward.1} parent=5 // pred_fallthru
        _
      %p248 = scmp.le.s32.totalorder 1, %s14
      %p249 = scmp.lt.s32.totalorder %s14, 3
      %p250 = pnand %p248, %p249
      %p251 = pneg %p250
      // Predicated region
      $region33: #{memory_layer_forward.1} parent=5 // pred_check
        _
      $region34: #{memory_layer_forward.1} parent=5 // pred_check_branch
        %253 = sbr.rel (%p250) target = $region36
      $region35: #{memory_layer_forward.1} parent=5 // pred_region
        %s254 = ssub.s32 %s14, 1
        // Predicated region
        $region37: #{memory_layer_forward.1} parent=35 // pred_check
          %p255 = pneg %p35
        $region38: #{memory_layer_forward.1} parent=35 // pred_check_branch
          %257 = sbr.rel (%p255) target = $region40
        $region39: #{memory_layer_forward.1} parent=35 // pred_region
          %258 = dma.done [#allocation3], 16
        $region40: #{memory_layer_forward.1} parent=35 // pred_fallthru
          _
        %259 = sfence
        %p260 = pneg %p35
        %p261 = pneg %p32
        %s262 = smul.u32 4, %s19
        %p263 = scmp.lt.s32.totalorder %s262, 7
        %s264 = scalar_select %p263, %s262, 7
        %s265 = smul.addr %s264, 8
        %s266 = scalar_lea.vmem %s1, %s265
        %p267 = pneg %p61
        %p268 = pneg %p58
        %s269 = smul.u32 4, %s19
        %p270 = scmp.lt.s32.totalorder %s269, 7
        %s271 = scalar_select %p270, %s269, 7
        %s272 = smul.addr %s271, 8
        %s273 = scalar_lea.vmem %s2, %s272
        %p274 = pneg %p87
        %p275 = pneg %p84
        %s276 = smul.u32 4, %s19
        %p277 = scmp.lt.s32.totalorder %s276, 7
        %s278 = scalar_select %p277, %s276, 7
        %s279 = smul.addr %s278, 8
        %s280 = scalar_lea.vmem %s3, %s279
        %p281 = pneg %p113
        %p282 = pneg %p110
        %p283 = pneg %p139
        %p284 = pneg %p136
        %s285 = smul.u32 4, %s19
        %p286 = scmp.lt.s32.totalorder %s285, 7
        %s287 = scalar_select %p286, %s285, 7
        %s288 = smul.addr %s287, 8
        %s289 = scalar_lea.vmem %s4, %s288
        %p290 = pneg %p165
        %p291 = pneg %p162
        %s292 = smul.u32 4, %s19
        %p293 = scmp.lt.s32.totalorder %s292, 7
        %s294 = scalar_select %p293, %s292, 7
        %s295 = smul.addr %s294, 8
        %s296 = scalar_lea.vmem %s5, %s295
        %p297 = pneg %p191
        %p298 = pneg %p188
        %s299 = smul.u32 4, %s19
        %p300 = scmp.lt.s32.totalorder %s299, 7
        %s301 = scalar_select %p300, %s299, 7
        %s302 = smul.addr %s301, 8
        %s303 = scalar_lea.vmem %s6, %s302
        %s304 = smul.u32 4, %s19
        %p305 = scmp.lt.s32.totalorder %s304, 7
        %s306 = scalar_select %p305, %s304, 7
        %s307 = smul.addr %s306, 8
        %s308 = scalar_lea.vmem %s1, %s307
        %s309 = smul.u32 4, %s19
        %s310 = smul.u32 4, %s19
        %p311 = scmp.lt.s32.totalorder %s310, 7
        %s312 = scalar_select %p311, %s310, 7
        %s313 = smul.addr %s312, 8
        %s314 = scalar_lea.vmem %s2, %s313
        %s315 = smul.u32 4, %s19
        %s316 = smul.u32 4, %s19
        %p317 = scmp.lt.s32.totalorder %s316, 7
        %s318 = scalar_select %p317, %s316, 7
        %s319 = smul.addr %s318, 8
        %s320 = scalar_lea.vmem %s3, %s319
        %s321 = smul.u32 4, %s19
        %s322 = smul.u32 4, %s19
        %p323 = scmp.lt.s32.totalorder %s322, 7
        %s324 = scalar_select %p323, %s322, 7
        %s325 = smul.addr %s324, 8
        %s326 = scalar_lea.vmem %s4, %s325
        %s327 = smul.u32 4, %s19
        %s328 = smul.u32 4, %s19
        %p329 = scmp.lt.s32.totalorder %s328, 7
        %s330 = scalar_select %p329, %s328, 7
        %s331 = smul.addr %s330, 8
        %s332 = scalar_lea.vmem %s5, %s331
        %s333 = smul.u32 4, %s19
        %s334 = smul.u32 4, %s19
        %p335 = scmp.lt.s32.totalorder %s334, 7
        %s336 = scalar_select %p335, %s334, 7
        %s337 = smul.addr %s336, 8
        %s338 = scalar_lea.vmem %s6, %s337
        %s339 = smul.u32 4, %s19
        %s340 = sld [smem:[#allocation2]]
        %s341 = sld [smem:[#allocation2 + $0x1]]
        %s342 = sld [smem:[#allocation2 + $0x2]]
        %s343 = sld [smem:[#allocation2 + $0x3]]
        %s344 = sld [smem:[#allocation2 + $0x4]]
        %s345 = sld [smem:[#allocation2 + $0x5]]
        %s346 = sld [smem:[#allocation2 + $0x6]]
        %v347 = vld [vmem:[%s308] sm:$0xff]
        %v348 = vld [vmem:[%s308 + $0x8] sm:$0xff]
        %v349 = vld [vmem:[%s308 + $0x10] sm:$0xff]
        %v350 = vld [vmem:[%s308 + $0x18] sm:$0xff]
        %v351 = vld [vmem:[%s314] sm:$0xff]
        %v352 = vld [vmem:[%s314 + $0x8] sm:$0xff]
        %v353 = vld [vmem:[%s314 + $0x10] sm:$0xff]
        %v354 = vld [vmem:[%s314 + $0x18] sm:$0xff]
        %v355 = vld [vmem:[%s320] sm:$0xff]
        %v356 = vld [vmem:[%s320 + $0x8] sm:$0xff]
        %v357 = vld [vmem:[%s320 + $0x10] sm:$0xff]
        %v358 = vld [vmem:[%s320 + $0x18] sm:$0xff]
        %v359 = vstv %s344
        %v360 = vmul.f32 %v359, %v351
        %v361 = vmul.f32 %v359, %v352
        %v362 = vmul.f32 %v359, %v353
        %v363 = vmul.f32 %v359, %v354
        %v364 = vstv %s345
        %v365 = vmul.f32 %v364, %v355
        %v366 = vmul.f32 %v364, %v356
        %v367 = vmul.f32 %v364, %v357
        %v368 = vmul.f32 %v364, %v358
        %v369 = vadd.f32 %v360, %v365
        %v370 = vadd.f32 %v361, %v366
        %v371 = vadd.f32 %v362, %v367
        %v372 = vadd.f32 %v363, %v368
        %v373 = vstv %s346
        %v374 = vmul.f32 %v373, %v347
        %v375 = vmul.f32 %v373, %v348
        %v376 = vmul.f32 %v373, %v349
        %v377 = vmul.f32 %v373, %v350
        %v378 = vadd.f32 %v369, %v374
        %v379 = vadd.f32 %v370, %v375
        %v380 = vadd.f32 %v371, %v376
        %v381 = vadd.f32 %v372, %v377
        %382 = vst [vmem:[%s326] sm:$0xff] %v378
        %383 = vst [vmem:[%s326 + $0x8] sm:$0xff] %v379
        %384 = vst [vmem:[%s326 + $0x10] sm:$0xff] %v380
        %385 = vst [vmem:[%s326 + $0x18] sm:$0xff] %v381
        %v386 = vstv %s340
        %v387 = vmul.f32 %v386, %v351
        %v388 = vmul.f32 %v386, %v352
        %v389 = vmul.f32 %v386, %v353
        %v390 = vmul.f32 %v386, %v354
        %v391 = vstv %s341
        %v392 = vmul.f32 %v391, %v347
        %v393 = vmul.f32 %v391, %v348
        %v394 = vmul.f32 %v391, %v349
        %v395 = vmul.f32 %v391, %v350
        %v396 = vadd.f32 %v387, %v392
        %v397 = vadd.f32 %v388, %v393
        %v398 = vadd.f32 %v389, %v394
        %v399 = vadd.f32 %v390, %v395
        %400 = vst [vmem:[%s332] sm:$0xff] %v396
        %401 = vst [vmem:[%s332 + $0x8] sm:$0xff] %v397
        %402 = vst [vmem:[%s332 + $0x10] sm:$0xff] %v398
        %403 = vst [vmem:[%s332 + $0x18] sm:$0xff] %v399
        %v404 = vstv %s342
        %v405 = vmul.f32 %v404, %v355
        %v406 = vmul.f32 %v404, %v356
        %v407 = vmul.f32 %v404, %v357
        %v408 = vmul.f32 %v404, %v358
        %v409 = vstv %s343
        %v410 = vmul.f32 %v409, %v347
        %v411 = vmul.f32 %v409, %v348
        %v412 = vmul.f32 %v409, %v349
        %v413 = vmul.f32 %v409, %v350
        %v414 = vadd.f32 %v405, %v410
        %v415 = vadd.f32 %v406, %v411
        %v416 = vadd.f32 %v407, %v412
        %v417 = vadd.f32 %v408, %v413
        %418 = vst [vmem:[%s338] sm:$0xff] %v414
        %419 = vst [vmem:[%s338 + $0x8] sm:$0xff] %v415
        %420 = vst [vmem:[%s338 + $0x10] sm:$0xff] %v416
        %421 = vst [vmem:[%s338 + $0x18] sm:$0xff] %v417
        %s422 = smul.u32 4, %s19
        %p423 = scmp.lt.s32.totalorder %s422, 7
        %s424 = scalar_select %p423, %s422, 7
        %s425 = smul.addr %s424, 8
        %s426 = scalar_lea.vmem %s4, %s425
        %s427 = smul.u32 4, %s19
        %p428 = scmp.lt.s32.totalorder %s427, 7
        %s429 = scalar_select %p428, %s427, 7
        %s430 = smul.addr %s429, 8
        %s431 = scalar_lea.vmem %s5, %s430
        %s432 = smul.u32 4, %s19
        %p433 = scmp.lt.s32.totalorder %s432, 7
        %s434 = scalar_select %p433, %s432, 7
        %s435 = smul.addr %s434, 8
        %s436 = scalar_lea.vmem %s6, %s435
        // Predicated region
        $region41: #{memory_layer_forward.1} parent=35 // pred_check
          %p437 = pneg %p136
        $region42: #{memory_layer_forward.1} parent=35 // pred_check_branch
          %439 = sbr.rel (%p437) target = $region44
        $region43: #{memory_layer_forward.1} parent=35 // pred_region
          %s440 = smul.u32 4, %s19
        $region44: #{memory_layer_forward.1} parent=35 // pred_fallthru
          _
        // Predicated region
        $region45: #{memory_layer_forward.1} parent=35 // pred_check
          %p441 = pneg %p162
        $region46: #{memory_layer_forward.1} parent=35 // pred_check_branch
          %443 = sbr.rel (%p441) target = $region48
        $region47: #{memory_layer_forward.1} parent=35 // pred_region
          %s444 = smul.u32 4, %s19
        $region48: #{memory_layer_forward.1} parent=35 // pred_fallthru
          _
        // Predicated region
        $region49: #{memory_layer_forward.1} parent=35 // pred_check
          %p445 = pneg %p188
        $region50: #{memory_layer_forward.1} parent=35 // pred_check_branch
          %447 = sbr.rel (%p445) target = $region52
        $region51: #{memory_layer_forward.1} parent=35 // pred_region
          %s448 = smul.u32 4, %s19
        $region52: #{memory_layer_forward.1} parent=35 // pred_fallthru
          _
      $region36: #{memory_layer_forward.1} parent=5 // pred_fallthru
        _
      %p449 = scmp.le.s32.totalorder 2, %s14
      // Predicated region
      $region53: #{memory_layer_forward.1} parent=5 // pred_check
        %p450 = pneg %p449
      $region54: #{memory_layer_forward.1} parent=5 // pred_check_branch
        %452 = sbr.rel (%p450) target = $region56
      $region55: #{memory_layer_forward.1} parent=5 // pred_region
        %s453 = ssub.s32 %s14, 2
        // Predicated region
        $region57: #{memory_layer_forward.1} parent=55 // pred_check
          %p454 = pneg %p142
        $region58: #{memory_layer_forward.1} parent=55 // pred_check_branch
          %456 = sbr.rel (%p454) target = $region60
        $region59: #{memory_layer_forward.1} parent=55 // pred_region
          %s457 = smul.u32 4, %s20
          %p458 = scmp.lt.s32.totalorder %s457, 7
          %s459 = scalar_select %p458, %s457, 7
          %s460 = smul.addr %s459, 8
          %s461 = scalar_lea.vmem %s4, %s460
        $region60: #{memory_layer_forward.1} parent=55 // pred_fallthru
          _
        // Predicated region
        $region61: #{memory_layer_forward.1} parent=55 // pred_check
          %p462 = pneg %p168
        $region62: #{memory_layer_forward.1} parent=55 // pred_check_branch
          %464 = sbr.rel (%p462) target = $region64
        $region63: #{memory_layer_forward.1} parent=55 // pred_region
          %s465 = smul.u32 4, %s20
          %p466 = scmp.lt.s32.totalorder %s465, 7
          %s467 = scalar_select %p466, %s465, 7
          %s468 = smul.addr %s467, 8
          %s469 = scalar_lea.vmem %s5, %s468
        $region64: #{memory_layer_forward.1} parent=55 // pred_fallthru
          _
        // Predicated region
        $region65: #{memory_layer_forward.1} parent=55 // pred_check
          %p470 = pneg %p194
        $region66: #{memory_layer_forward.1} parent=55 // pred_check_branch
          %472 = sbr.rel (%p470) target = $region68
        $region67: #{memory_layer_forward.1} parent=55 // pred_region
          %s473 = smul.u32 4, %s20
          %p474 = scmp.lt.s32.totalorder %s473, 7
          %s475 = scalar_select %p474, %s473, 7
          %s476 = smul.addr %s475, 8
          %s477 = scalar_lea.vmem %s6, %s476
        $region68: #{memory_layer_forward.1} parent=55 // pred_fallthru
          _
      $region56: #{memory_layer_forward.1} parent=5 // pred_fallthru
        _
    $region6: #{memory_layer_forward.1} parent=1 // loop_footer
      %s18 = sadd.s32 1, %s14
    $region7: #{memory_layer_forward.1} parent=1 // loop_footer_branch
      %13 = sbr.rel target = $region3
    $region8: #{memory_layer_forward.1} parent=1 // loop_exit
      _
    %478 = vsyncpa [#allocation3], 1
    %s479 = scalar_lea.sflag [#allocation3], 1
    %480 = vsyncpa %s479, 1

</llo_original>
